<compile_context>
chip_gen: v7x
topology: tpu7x:2x2x1
jax: 0.10.0
libtpu: 0.0.40
codegen_flags: <defaults>
</compile_context>

<pallas_src>
import functools
import math

import jax
import jax.numpy as jnp
from jax.experimental import pallas as pl
from jax.experimental.pallas import tpu as pltpu

PAD = 0
SMOOTHING = 0.1


def _label_smoothing_kernel(x_ref, tgt_ref, row_loss_ref, *, padding_idx,
                            confidence, smooth_val, c0, n_rows, mask_tail):
    x = x_ref[...].astype(jnp.float32)            # (tm, V) log-probs
    tgt = tgt_ref[...]                            # (tm, 1) int32 targets
    tm, v = x.shape

    # (1, V) column indices; broadcasting against the (tm, 1) targets produces
    # the (tm, V) masks without materializing a full iota tile.
    col = jax.lax.broadcasted_iota(jnp.int32, (1, v), 1)

    # Fused single pass: the contribution of element (i, j) to
    #   sum_j true_dist[i, j] * x[i, j]
    # is 0 at the pad column, confidence*x at the target column, and
    # smooth_val*x elsewhere.  Selecting on the *products* (rather than
    # multiplying by a selected 0/conf/smooth coefficient afterwards) keeps a
    # -inf log-prob in a masked column from becoming 0 * inf = NaN.
    # Degenerate configs (confidence == 0 or smooth_val == 0) are resolved at
    # trace time so no 0 * (-inf) is ever formed for those terms either.
    tgt_term = confidence * x if confidence != 0.0 else 0.0
    smooth_term = smooth_val * x if smooth_val != 0.0 else 0.0
    contrib = jnp.where(col == padding_idx, 0.0,
                        jnp.where(col == tgt, tgt_term, smooth_term))
    loss = c0 - jnp.sum(contrib, axis=-1, keepdims=True)     # (tm, 1)

    # Rows whose target is the padding index contribute exactly 0; so do rows
    # past the true N in the partial last block, whose DMA'd contents
    # (both x and target) are arbitrary.
    valid = tgt != padding_idx
    if mask_tail:
        row = pl.program_id(0) * tm + jax.lax.broadcasted_iota(
            jnp.int32, (tm, 1), 0)
        valid = jnp.logical_and(valid, row < n_rows)
    row_loss_ref[...] = jnp.where(valid, loss, 0.0)


def _vmem_budget():
    """Return (target x-block bytes, vmem_limit_bytes), generation-aware."""
    vmem_bytes = 64 << 20                       # conservative default (v7x per-TC)
    try:
        vmem_bytes = int(pltpu.get_tpu_info().vmem_capacity_bytes)
    except Exception:
        pass
    if vmem_bytes >= (96 << 20):                # v5e / v6e: 128 MiB physical VMEM
        return 16 << 20, 64 << 20
    return 8 << 20, 32 << 20                    # v7x: 64 MiB per TensorCore


def _choose_row_tile(n, v, itemsize, target_block_bytes):
    """Largest multiple-of-8 row tile whose (tm, V) x block fits the byte budget.

    Accounts for lane padding: a (tm, V) block occupies ceil(V/128)*128 lanes of
    VMEM regardless of V.
    """
    v_lanes = ((v + 127) // 128) * 128
    tm = (target_block_bytes // (v_lanes * itemsize)) // 8 * 8
    tm = max(8, tm)
    n_up = ((n + 7) // 8) * 8
    return min(tm, n_up)


def label_smoothing_loss(x, target, *, padding_idx=PAD, smoothing=SMOOTHING):
    """x: (N, V) f32/bf16 log-probabilities, target: (N,) int. Returns scalar f32."""
    n, v = x.shape
    confidence = 1.0 - smoothing
    smooth_val = smoothing / (v - 2)
    # log() terms of the closed-form loss are compile-time constants (0*log(0):=0).
    c0 = 0.0
    if confidence > 0.0:
        c0 += confidence * math.log(confidence)
    if smooth_val > 0.0:
        c0 += (v - 2) * smooth_val * math.log(smooth_val)

    block_bytes, vmem_limit = _vmem_budget()
    tm = _choose_row_tile(n, v, x.dtype.itemsize, block_bytes)
    grid = pl.cdiv(n, tm)
    tgt2d = target.reshape(n, 1).astype(jnp.int32)

    kernel = functools.partial(
        _label_smoothing_kernel, padding_idx=int(padding_idx),
        confidence=float(confidence), smooth_val=float(smooth_val),
        c0=float(c0), n_rows=n, mask_tail=(n % tm) != 0)

    # TODO(synk): for V < 128, rows could be repacked into lanes ((N/k, k*V)
    # layout) to fill all 128 lanes per vreg; skipped here.
    row_losses = pl.pallas_call(
        kernel,
        out_shape=jax.ShapeDtypeStruct((n, 1), jnp.float32),
        grid_spec=pltpu.PrefetchScalarGridSpec(
            num_scalar_prefetch=0,
            grid=(grid,),
            in_specs=[
                pl.BlockSpec((tm, v), lambda i: (i, 0)),
                pl.BlockSpec((tm, 1), lambda i: (i, 0)),
            ],
            out_specs=pl.BlockSpec((tm, 1), lambda i: (i, 0)),
        ),
        compiler_params=pltpu.CompilerParams(
            dimension_semantics=("parallel",),   # independent row chunks (megacore on v7x)
            vmem_limit_bytes=vmem_limit),
        cost_estimate=pl.CostEstimate(
            flops=6 * n * v,
            transcendentals=0,
            bytes_accessed=int(n * v * x.dtype.itemsize + 8 * n)),
    )(x, tgt2d)
    return jnp.sum(row_losses)


def _reference(x, target, padding_idx, smoothing):
    n, v = x.shape
    confidence = 1.0 - smoothing
    smooth_val = smoothing / (v - 2)
    true_dist = jnp.full((n, v), smooth_val, dtype=jnp.float32)
    true_dist = true_dist.at[jnp.arange(n), target].set(confidence)
    true_dist = true_dist.at[:, padding_idx].set(0.0)
    true_dist = jnp.where((target == padding_idx)[:, None], 0.0, true_dist)
    contrib = jnp.where(true_dist > 0.0,
                        true_dist * (jnp.log(true_dist) - x.astype(jnp.float32)),
                        0.0)
    return jnp.sum(contrib)


if __name__ == "__main__":
    key = jax.random.PRNGKey(0)
    k1, k2, k3, k4, k5, k6 = jax.random.split(key, 6)

    # Case 1: tile-aligned N, with x[:, PAD] = -inf (exercises the NaN fix).
    N, V = 8, 32
    logits = jax.random.normal(k1, (N, V), dtype=jnp.float32)
    x = jax.nn.log_softmax(logits, axis=-1)
    x = x.at[:, PAD].set(-jnp.inf)
    target = jax.random.randint(k2, (N,), 0, V, dtype=jnp.int32)
    target = target.at[3].set(PAD)           # exercise the padded-row masking
    loss = jax.block_until_ready(label_smoothing_loss(x, target))
    ref = jax.block_until_ready(_reference(x, target, PAD, SMOOTHING))
    assert jnp.isfinite(loss), loss
    assert jnp.allclose(loss, ref, rtol=1e-5, atol=1e-5), (loss, ref)

    # Case 2: N not a multiple of the row tile (exercises the partial-block path).
    N2 = 13
    logits2 = jax.random.normal(k3, (N2, V), dtype=jnp.float32)
    x2 = jax.nn.log_softmax(logits2, axis=-1)
    target2 = jax.random.randint(k4, (N2,), 0, V, dtype=jnp.int32)
    target2 = target2.at[5].set(PAD)
    loss2 = jax.block_until_ready(label_smoothing_loss(x2, target2))
    ref2 = jax.block_until_ready(_reference(x2, target2, PAD, SMOOTHING))
    assert jnp.allclose(loss2, ref2, rtol=1e-5, atol=1e-5), (loss2, ref2)

    # Case 3: wider vocab (multiple lane vregs) with bf16 log-probs.
    N3, V3 = 24, 512
    logits3 = jax.random.normal(k5, (N3, V3), dtype=jnp.float32)
    x3 = jax.nn.log_softmax(logits3, axis=-1).astype(jnp.bfloat16)
    target3 = jax.random.randint(k6, (N3,), 0, V3, dtype=jnp.int32)
    target3 = target3.at[0].set(PAD)
    loss3 = jax.block_until_ready(label_smoothing_loss(x3, target3))
    ref3 = jax.block_until_ready(_reference(x3.astype(jnp.float32), target3,
                                            PAD, SMOOTHING))
    assert jnp.allclose(loss3, ref3, rtol=1e-4, atol=1e-3), (loss3, ref3)

    print("KERNEL_OK")
</pallas_src>

<mosaic_0001>
module attributes {stable_mosaic.version = 11 : i64} {
  func.func @_label_smoothing_kernel(%arg0: i32, %arg1: memref<8x32xf32, #tpu.memory_space<vmem>>, %arg2: memref<8x1xi32, #tpu.memory_space<vmem>>, %arg3: memref<8x1xf32, #tpu.memory_space<vmem>>) attributes {dimension_semantics = [#tpu.dimension_semantics<parallel>], iteration_bounds = array<i64: 1>, scalar_prefetch = 0 : i64, scratch_operands = 0 : i64, tpu.core_type = #tpu.core_type<tc>, window_params = [{transform_indices = @transform_0, window_bounds = array<i64: 8, 32>}, {transform_indices = @transform_1, window_bounds = array<i64: 8, 1>}, {transform_indices = @transform_2, window_bounds = array<i64: 8, 1>}]} {
    %c0 = arith.constant 0 : index
    %c0_0 = arith.constant 0 : index
    %0 = vector.load %arg1[%c0, %c0_0] : memref<8x32xf32, #tpu.memory_space<vmem>>, vector<8x32xf32>
    %c0_1 = arith.constant 0 : index
    %c0_2 = arith.constant 0 : index
    %1 = vector.load %arg2[%c0_1, %c0_2] : memref<8x1xi32, #tpu.memory_space<vmem>>, vector<8x1xi32>
    %2 = tpu.iota {dimensions = array<i32: 1>} : vector<1x32xi32>
    %cst = arith.constant 0.899999976 : f32
    %3 = vector.broadcast %cst : f32 to vector<8x32xf32>
    %4 = arith.mulf %3, %0 : vector<8x32xf32>
    %cst_3 = arith.constant 0.00333333341 : f32
    %5 = vector.broadcast %cst_3 : f32 to vector<8x32xf32>
    %6 = arith.mulf %5, %0 : vector<8x32xf32>
    %c0_i32 = arith.constant 0 : i32
    %7 = vector.broadcast %c0_i32 : i32 to vector<1x32xi32>
    %8 = arith.cmpi eq, %2, %7 : vector<1x32xi32>
    %9 = vector.broadcast %2 : vector<1x32xi32> to vector<8x32xi32>
    %10 = vector.broadcast %1 : vector<8x1xi32> to vector<8x32xi32>
    %11 = arith.cmpi eq, %9, %10 : vector<8x32xi32>
    %12 = arith.select %11, %4, %6 : vector<8x32xi1>, vector<8x32xf32>
    %cst_4 = arith.constant 0.000000e+00 : f32
    %13 = vector.shape_cast %8 : vector<1x32xi1> to vector<1x32xi1>
    %14 = vector.broadcast %13 : vector<1x32xi1> to vector<8x32xi1>
    %15 = vector.broadcast %cst_4 : f32 to vector<8x32xf32>
    %16 = arith.select %14, %15, %12 : vector<8x32xi1>, vector<8x32xf32>
    %cst_5 = arith.constant dense<0.000000e+00> : vector<8xf32>
    %17 = vector.multi_reduction <add>, %16, %cst_5 [1] : vector<8x32xf32> to vector<8xf32>
    %18 = vector.shape_cast %17 : vector<8xf32> to vector<8x1xf32>
    %cst_6 = arith.constant -0.665202737 : f32
    %19 = vector.broadcast %cst_6 : f32 to vector<8x1xf32>
    %20 = arith.subf %19, %18 : vector<8x1xf32>
    %c0_i32_7 = arith.constant 0 : i32
    %21 = vector.broadcast %c0_i32_7 : i32 to vector<8x1xi32>
    %22 = arith.cmpi ne, %1, %21 : vector<8x1xi32>
    %cst_8 = arith.constant 0.000000e+00 : f32
    %23 = vector.broadcast %cst_8 : f32 to vector<8x1xf32>
    %24 = arith.select %22, %20, %23 : vector<8x1xi1>, vector<8x1xf32>
    %c0_9 = arith.constant 0 : index
    %c0_10 = arith.constant 0 : index
    %25 = vector.load %arg3[%c0_9, %c0_10] : memref<8x1xf32, #tpu.memory_space<vmem>>, vector<8x1xf32>
    tpu.vector_store %arg3[%c0_9, %c0_10], %24 {strides = array<i32>} : memref<8x1xf32, #tpu.memory_space<vmem>>, vector<8x1xf32>,
    return
  }
  func.func @transform_0(%arg0: i32) -> (i32, i32) {
    %c0_i32 = arith.constant 0 : i32
    %c0_i32_0 = arith.constant 0 : i32
    return %arg0, %c0_i32 : i32, i32
  }
  func.func @transform_1(%arg0: i32) -> (i32, i32) {
    %c0_i32 = arith.constant 0 : i32
    %c0_i32_0 = arith.constant 0 : i32
    return %arg0, %c0_i32 : i32, i32
  }
  func.func @transform_2(%arg0: i32) -> (i32, i32) {
    %c0_i32 = arith.constant 0 : i32
    %c0_i32_0 = arith.constant 0 : i32
    return %arg0, %c0_i32 : i32, i32
  }
}

</mosaic_0001>

<llo_original>
// kernel: tpu_custom_call.1
$region0: #{tpu_custom_call.1}
  #allocation0 [shape = 'u32[]', space=smem, size = 0x4, offset = 0x4, fixed_abs, tag = 'smem constant byte address 0x4 - core index']
  #allocation1 [shape = 'u32[144,128]{1,0:T(1,128)}', space=vmem, size = 0x12000, scoped, tag = 'internal scratch']
  %s0 = inlined_call_operand.vmem [shape: f32[8,32], index: 0, kind: input, shape index: {}]
  %s1 = inlined_call_operand.vmem [shape: s32[8,1], index: 1, kind: input, shape index: {}]
  %s2 = inlined_call_operand.vmem [shape: f32[8,1], index: 2, kind: output, shape index: {}]
  %s3 = sld [smem:[#allocation0]]
  $region18: #{tpu_custom_call.1} parent=0
    _
  %s5 = ssub.s32 1, %s3
  %s6 = scalar_select 0, %s5, %s3
  // Predicated region
  $region2: #{tpu_custom_call.1} parent=0 // pred_check
    _
  $region3: #{tpu_custom_call.1} parent=0 // pred_check_branch
    %8 = sbr.rel (0) target = $region5
  $region4: #{tpu_custom_call.1} parent=0 // pred_region
    _
  $region5: #{tpu_custom_call.1} parent=0 // pred_fallthru
    _
  // Predicated region
  $region6: #{tpu_custom_call.1} parent=0 // pred_check
    _
  $region7: #{tpu_custom_call.1} parent=0 // pred_check_branch
    %10 = sbr.rel (0) target = $region9
  $region8: #{tpu_custom_call.1} parent=0 // pred_region
    _
  $region9: #{tpu_custom_call.1} parent=0 // pred_fallthru
    _
  %v11 = vld [vmem:[%s0] sm:$0xff]
  %v12 = vld [vmem:[%s1] sm:$0xff]
  %v13 = vlaneseq
  %v14 = vand.u32 %v13, 127
  %v15 = vmul.f32 %v11, 0.9
  %v16 = vmul.f32 %v11, 0.0033333334
  %vm17 = vcmp.eq.s32.totalorder %v14, 0
  %18 = vset.pattern.permute.xlu0 0
  %19 = vperm.xlu0 %18, %v12
  %v20 = vpop.permute.xlu0 %19
  %vm21 = vcmp.eq.s32.totalorder %v14, %v20
  %v22 = vsel %vm21, %v15, %v16
  %v23 = vsel %vm17, 1, 0
  %vm24 = vcmp.eq.s32.totalorder %v23, 1
  %v25 = vsel %vm24, 0.0, %v22
  %vm26 = vcmask 261120
  %v27 = vsel %vm26, %v25, 0.0
  %28 = vadd.xlane.f32.xlu0 %v27
  %v29 = vpop.xlane.xlu0 %28
  %v30 = vsub.f32 -0.66520274, %v29
  %vm31 = vcmp.ne.s32.totalorder %v12, 0
  %v32 = vsel %vm31, %v30, 0.0
  %vm33 = vcmask 7168
  %34 = vst.msk [vmem:[%s2] sm:$0xff] %vm33, %v32
  // Predicated region
  $region10: #{tpu_custom_call.1} parent=0 // pred_check
    _
  $region11: #{tpu_custom_call.1} parent=0 // pred_check_branch
    %36 = sbr.rel (0) target = $region13
  $region12: #{tpu_custom_call.1} parent=0 // pred_region
    _
  $region13: #{tpu_custom_call.1} parent=0 // pred_fallthru
    _
  // Predicated region
  $region14: #{tpu_custom_call.1} parent=0 // pred_check
    _
  $region15: #{tpu_custom_call.1} parent=0 // pred_check_branch
    %38 = sbr.rel (0) target = $region17
  $region16: #{tpu_custom_call.1} parent=0 // pred_region
    _
  $region17: #{tpu_custom_call.1} parent=0 // pred_fallthru
    _

</llo_original>
